<compile_context>
chip_gen: v7x
topology: tpu7x:2x2x1
jax: 0.10.0
libtpu: 0.0.40
codegen_flags: <defaults>
</compile_context>

<pallas_src>
import math
import functools

import jax
import jax.numpy as jnp
from jax.experimental import pallas as pl
from jax.experimental.pallas import tpu as pltpu


def make_pe_table(d_model: int, max_len: int, dtype=jnp.float32):
    """Deterministic sin/cos positional-encoding buffer, identical to __init__."""
    position = jnp.arange(max_len, dtype=jnp.float32)[:, None]            # (max_len, 1)
    div_term = jnp.exp(
        jnp.arange(0, d_model, 2, dtype=jnp.float32) * (-math.log(10000.0) / d_model)
    )                                                                      # (d_model/2,)
    pe = jnp.zeros((max_len, d_model), jnp.float32)
    pe = pe.at[:, 0::2].set(jnp.sin(position * div_term))
    pe = pe.at[:, 1::2].set(jnp.cos(position * div_term))
    return pe.astype(dtype)


def _vmem_budgets():
    """Return (vmem_limit_bytes, tile_budget_bytes), generation-aware."""
    kind = ""
    try:
        kind = jax.devices()[0].device_kind.lower()
    except Exception:
        pass
    if ("v5" in kind) or ("v6" in kind):
        # 128 MiB physical VMEM parts: larger scoped limit + tile budget.
        return 64 * 1024 * 1024, 48 * 1024 * 1024
    # v7x (64 MiB physical), CPU interpret, or unknown: stay conservative.
    return 32 * 1024 * 1024, 24 * 1024 * 1024


def _choose_tiles(B: int, S: int, D: int, itemsize: int, tile_budget_bytes: int):
    """Pick (batch_tile BB, seq_tile TS) so the double-buffered working set
    (~ (4*BB + 2) * TS * D * itemsize: x + out double-buffered, pe 2 buffers)
    fills but does not exceed the VMEM tile budget."""
    sub = max(8, 32 // max(1, itemsize))          # sublane quantum: 8 f32, 16 bf16
    row = max(1, D * itemsize)

    # Step 1: grow the sequence tile with BB = 1.
    ts_cap = ((tile_budget_bytes // (6 * row)) // sub) * sub
    TS = S if (ts_cap >= S or ts_cap < sub) else ts_cap
    # TODO(synk): if a single (sub, D) row-tile already exceeds the budget
    # (enormous d_model) this degrades to a full-S block; split D instead.

    # Step 2: grow the batch tile for the chosen TS.
    bb_cap = (tile_budget_bytes - 2 * TS * row) // (4 * TS * row)
    BB = max(1, min(B, bb_cap))

    # Step 3: keep >= 2 grid steps when possible so v7x megacore can shard the
    # memory-bound stream across both TensorCores.
    if pl.cdiv(S, TS) * pl.cdiv(B, BB) < 2:
        if B >= 2:
            BB = (B + 1) // 2
        elif S >= 2 * sub:
            TS = max(sub, ((S // 2) // sub) * sub)
    return BB, TS


def _pe_kernel(seed_ref, x_ref, pe_ref, o_ref, *, p: float, training: bool):
    # x_ref / o_ref blocks: (BB, TS, D); pe_ref block: (TS, D) -> broadcast add.
    y = x_ref[...] + pe_ref[...]

    if (not training) or p <= 0.0:
        o_ref[...] = y.astype(o_ref.dtype)
        return
    if p >= 1.0:
        o_ref[...] = jnp.zeros(o_ref.shape, o_ref.dtype)
        return

    # ---- stateless per-element dropout mask --------------------------------
    # TODO(synk): counter-hash PRNG; cannot bit-match torch's RNG stream, only
    # the Bernoulli(1-p) keep / 1/(1-p) scaling semantics.
    s_id = pl.program_id(0)
    b_id = pl.program_id(1)
    BB, TS, _ = y.shape
    bi = (jax.lax.broadcasted_iota(jnp.int32, y.shape, 0) + b_id * BB).astype(jnp.uint32)
    si = (jax.lax.broadcasted_iota(jnp.int32, y.shape, 1) + s_id * TS).astype(jnp.uint32)
    di = jax.lax.broadcasted_iota(jnp.int32, y.shape, 2).astype(jnp.uint32)
    seed = seed_ref[0].astype(jnp.uint32)

    h = ((bi * jnp.uint32(0x9E3779B1))
         ^ (si * jnp.uint32(0x85EBCA77))
         ^ (di * jnp.uint32(0xC2B2AE3D))
         ^ (seed * jnp.uint32(0x27D4EB2F)))
    # lowbias32 finalizer: full-avalanche 32-bit mix, VPU-only integer ops,
    # fully hidden under the HBM-bound DMA stream.
    h = h ^ (h >> 16)
    h = h * jnp.uint32(0x7FEB352D)
    h = h ^ (h >> 15)
    h = h * jnp.uint32(0x846CA68B)
    h = h ^ (h >> 16)

    # Drop with probability ~p: compare raw uint32 bits against p * 2^32.
    thresh = jnp.uint32(min(int(round(p * 4294967296.0)), 4294967295))
    keep = h >= thresh
    scale = jnp.float32(1.0 / (1.0 - p))          # scale in f32 (bf16-safe)
    o_ref[...] = jnp.where(keep, y.astype(jnp.float32) * scale,
                           jnp.float32(0.0)).astype(o_ref.dtype)


def positional_encoding(x, pe, *, p: float = 0.1, training: bool = False,
                        seed: int = 0, seq_tile: int | None = None,
                        batch_tile: int | None = None):
    """x: (B, S, D); pe: (max_len, D) with max_len >= S. Returns dropout(x + pe[:S])."""
    B, S, D = x.shape
    assert pe.ndim == 2 and pe.shape[0] >= S and pe.shape[1] == D
    if pe.dtype != x.dtype:
        # Pre-cast the table once at init to keep this off the per-call path.
        pe = pe.astype(x.dtype)

    itemsize = jnp.dtype(x.dtype).itemsize
    vmem_limit, tile_budget = _vmem_budgets()
    BB, TS = _choose_tiles(B, S, D, itemsize, tile_budget)
    if seq_tile is not None:
        TS = seq_tile
    if batch_tile is not None:
        BB = batch_tile
    num_s = pl.cdiv(S, TS)
    num_b = pl.cdiv(B, BB)

    kernel = functools.partial(_pe_kernel, p=float(p), training=bool(training))
    seed_arr = jnp.asarray([seed], dtype=jnp.int32)

    # TODO(synk): if d_model is not a multiple of 128, stores lower to masked
    # vst.msk partial stores; a wrapper-side flatten of (S, D) into one lane-dense
    # axis would fix that. Standard GPT widths (multiples of 128) are already dense.
    return pl.pallas_call(
        kernel,
        out_shape=jax.ShapeDtypeStruct((B, S, D), x.dtype),
        grid_spec=pl.GridSpec(
            # Batch is innermost so the pe tile (indexed only by s) stays resident
            # across consecutive batch blocks and is not re-DMA'd per step.
            grid=(num_s, num_b),
            in_specs=[
                pl.BlockSpec(memory_space=pltpu.MemorySpace.SMEM),       # seed scalar
                pl.BlockSpec((BB, TS, D), lambda s, b: (b, s, 0)),       # x tile
                pl.BlockSpec((TS, D), lambda s, b: (s, 0)),              # pe tile
            ],
            out_specs=pl.BlockSpec((BB, TS, D), lambda s, b: (b, s, 0)),
        ),
        # The op is x += pe: alias x (input index 1; seed is 0) to the output.
        # Callers should donate x at their jit boundary to make this truly in-place.
        input_output_aliases={1: 0},
        compiler_params=pltpu.CompilerParams(
            dimension_semantics=("parallel", "parallel"),
            vmem_limit_bytes=vmem_limit,
        ),
    )(seed_arr, x, pe)


if __name__ == "__main__":
    key = jax.random.PRNGKey(0)
    B, S, D = 2, 16, 128          # small demo shapes; D lane-dense (multiple of 128)
    MAX_LEN = 64                  # small stand-in for the default max_len=5000
    P_DROP = 0.1

    x = jax.random.normal(key, (B, S, D), dtype=jnp.float32)
    pe = make_pe_table(D, MAX_LEN)                     # f32 == x.dtype
    ref = x + pe[:S][None, :, :]

    # --- Eval mode, forced small tiles: grid = (2 s-tiles x 2 batch blocks) ----
    out = positional_encoding(x, pe, p=P_DROP, training=False, seed=0,
                              seq_tile=8, batch_tile=1)
    out = jax.block_until_ready(out)
    assert out.shape == (B, S, D) and out.dtype == x.dtype
    assert jnp.allclose(out, ref, atol=1e-6), "eval-mode mismatch vs reference"

    # --- Eval mode, auto tiles (exercises the VMEM-budget tile chooser) --------
    out_auto = jax.block_until_ready(
        positional_encoding(x, pe, p=P_DROP, training=False, seed=0))
    assert jnp.allclose(out_auto, ref, atol=1e-6), "auto-tile mismatch vs reference"

    # --- Ragged S: cdiv grid + masked partial last block -----------------------
    S2 = 12
    x2 = jax.random.normal(jax.random.PRNGKey(1), (B, S2, D), dtype=jnp.float32)
    ref2 = x2 + pe[:S2][None, :, :]
    out2 = jax.block_until_ready(
        positional_encoding(x2, pe, p=P_DROP, training=False, seed=0,
                            seq_tile=8, batch_tile=2))
    assert jnp.allclose(out2, ref2, atol=1e-6), "ragged-S mismatch vs reference"

    # --- Training mode: Bernoulli(1-p) keep, kept values scaled by 1/(1-p) -----
    out_tr = jax.block_until_ready(
        positional_encoding(x, pe, p=P_DROP, training=True, seed=1234,
                            seq_tile=8, batch_tile=1))
    assert out_tr.shape == (B, S, D)
    assert bool(jnp.all(jnp.isfinite(out_tr)))
    kept = out_tr != 0
    expected_kept = ref * (1.0 / (1.0 - P_DROP))
    assert jnp.allclose(jnp.where(kept, out_tr, 0.0),
                        jnp.where(kept, expected_kept, 0.0),
                        rtol=1e-5, atol=1e-5), "kept values not scaled by 1/(1-p)"
    drop_frac = float(jnp.mean((~kept).astype(jnp.float32)))
    assert 0.02 < drop_frac < 0.30, f"unexpected drop fraction {drop_frac}"

    # Determinism: same seed -> identical mask.
    out_tr2 = jax.block_until_ready(
        positional_encoding(x, pe, p=P_DROP, training=True, seed=1234,
                            seq_tile=8, batch_tile=1))
    assert jnp.array_equal(out_tr, out_tr2), "dropout not deterministic for fixed seed"

    print("KERNEL_OK")
</pallas_src>

<mosaic_0001>
module attributes {stable_mosaic.version = 11 : i64} {
  func.func @_pe_kernel(%arg0: i32, %arg1: i32, %arg2: memref<1xi32, #tpu.memory_space<smem>>, %arg3: memref<1x8x128xf32, #tpu.memory_space<vmem>>, %arg4: memref<8x128xf32, #tpu.memory_space<vmem>>, %arg5: memref<1x8x128xf32, #tpu.memory_space<vmem>>) attributes {dimension_semantics = [#tpu.dimension_semantics<parallel>, #tpu.dimension_semantics<parallel>], iteration_bounds = array<i64: 2, 2>, scalar_prefetch = 0 : i64, scratch_operands = 0 : i64, tpu.core_type = #tpu.core_type<tc>, window_params = [{transform_indices = @transform_0, window_bounds = array<i64: 1>}, {transform_indices = @transform_1, window_bounds = array<i64: 1, 8, 128>}, {transform_indices = @transform_2, window_bounds = array<i64: 8, 128>}, {transform_indices = @transform_3, window_bounds = array<i64: 1, 8, 128>}]} {
    %c0 = arith.constant 0 : index
    %c0_0 = arith.constant 0 : index
    %c0_1 = arith.constant 0 : index
    %0 = vector.load %arg3[%c0, %c0_0, %c0_1] : memref<1x8x128xf32, #tpu.memory_space<vmem>>, vector<1x8x128xf32>
    %c0_2 = arith.constant 0 : index
    %c0_3 = arith.constant 0 : index
    %1 = vector.load %arg4[%c0_2, %c0_3] : memref<8x128xf32, #tpu.memory_space<vmem>>, vector<8x128xf32>
    %2 = vector.shape_cast %1 : vector<8x128xf32> to vector<1x8x128xf32>
    %3 = arith.addf %0, %2 : vector<1x8x128xf32>
    %c0_4 = arith.constant 0 : index
    %c0_5 = arith.constant 0 : index
    %c0_6 = arith.constant 0 : index
    %4 = vector.load %arg5[%c0_4, %c0_5, %c0_6] : memref<1x8x128xf32, #tpu.memory_space<vmem>>, vector<1x8x128xf32>
    tpu.vector_store %arg5[%c0_4, %c0_5, %c0_6], %3 {strides = array<i32>} : memref<1x8x128xf32, #tpu.memory_space<vmem>>, vector<1x8x128xf32>,
    return
  }
  func.func @transform_0(%arg0: i32, %arg1: i32) -> i32 {
    %c0_i32 = arith.constant 0 : i32
    %c0_i32_0 = arith.constant 0 : i32
    return %c0_i32 : i32
  }
  func.func @transform_1(%arg0: i32, %arg1: i32) -> (i32, i32, i32) {
    %c0_i32 = arith.constant 0 : i32
    %c0_i32_0 = arith.constant 0 : i32
    return %arg1, %arg0, %c0_i32 : i32, i32, i32
  }
  func.func @transform_2(%arg0: i32, %arg1: i32) -> (i32, i32) {
    %c0_i32 = arith.constant 0 : i32
    %c0_i32_0 = arith.constant 0 : i32
    return %arg0, %c0_i32 : i32, i32
  }
  func.func @transform_3(%arg0: i32, %arg1: i32) -> (i32, i32, i32) {
    %c0_i32 = arith.constant 0 : i32
    %c0_i32_0 = arith.constant 0 : i32
    return %arg1, %arg0, %c0_i32 : i32, i32, i32
  }
}

</mosaic_0001>

<llo_original>
// kernel: tpu_custom_call.1
$region0: #{tpu_custom_call.1}
  #allocation0 [shape = 'u32[]', space=smem, size = 0x4, offset = 0x4, fixed_abs, tag = 'smem constant byte address 0x4 - core index']
  #allocation1 [shape = 'u32[144,128]{1,0:T(1,128)}', space=vmem, size = 0x12000, scoped, tag = 'internal scratch']
  #allocation2 [shape = 's32[1]{0:T(128)S(6)}', space=smem, size = 0x200, scoped, tag = 'scoped memory for tpu_custom_call.1']
  %s0 = inlined_call_operand.<no memory space> [shape: s32[1], index: 0, kind: input, shape index: {}]
  %s1 = inlined_call_operand.hbm [shape: f32[2,16,128], index: 1, kind: input, shape index: {}, may-alias: {1,3}]
  %s2 = inlined_call_operand.vmem [shape: f32[64,128], index: 2, kind: input, shape index: {}]
  %s3 = inlined_call_operand.hbm [shape: f32[2,16,128], index: 3, kind: output, shape index: {}, may-alias: {1,3}]
  %s4 = sld [smem:[#allocation0]]
  $region49: #{tpu_custom_call.1} parent=0
    _
  %s6 = ssub.s32 1, %s4
  %s7 = scalar_select 0, %s6, %s4
  %8 = sst [smem:[#allocation2]] %s0
  $region1: #{tpu_custom_call.1} parent=0
    #allocation3 [shape = 'u8[8192]{0}', space=vmem, size = 0x2000, scoped, tag = 'input window, operand 1']
    #allocation4 [shape = 's32[2]{0}', space=sflag, size = 0x8, scoped, tag = 'scoped memory for tpu_custom_call.1']
    #allocation5 [shape = 's32[2]{0}', space=sflag, size = 0x8, scoped, tag = 'scoped memory for tpu_custom_call.1']
    #allocation6 [shape = 'u8[8192]{0}', space=vmem, size = 0x2000, scoped, tag = 'output window, operand 0']
    %9 = vsyncpa [#allocation4], 0
    %s10 = scalar_lea.sflag [#allocation4], 1
    %11 = vsyncpa %s10, 0
    %12 = vsyncpa [#allocation5], 0
    %s13 = scalar_lea.sflag [#allocation5], 1
    %14 = vsyncpa %s13, 0
    loop: start=0, step=1, limit=6
    $region2: #{tpu_custom_call.1} parent=1 // loop_pre_header
      _
    $region3: #{tpu_custom_call.1} parent=1 // loop_header
      %s16 = sphi 0, %s20
      %p17 = scmp.ge.s32.totalorder %s16, 6
      %s23 = sphi 0, %s35
      %s24 = sphi 0, %s31
      %s25 = sphi 0, %s23
      %s26 = sphi 0, %s24
      %s27 = sphi 0, %s25
      %s28 = sphi 0, %s26
      %s36 = sphi 0, %s36
      %s38 = sphi 0, %s36
      %s39 = sphi 0, %s38
      %s53 = sphi 0, %s39
      %s61 = sphi 0, %s63
      %s64 = sphi 0, %s61
      %s65 = sphi 0, %s64
      %s81 = sphi 0, %s65
      %s87 = sphi 0, %s89
      %s90 = sphi 0, %s87
      %s91 = sphi 0, %s90
      %s107 = sphi 0, %s91
      %s115 = sphi 0, %s117
      %s118 = sphi 0, %s115
      %s119 = sphi 0, %s118
      %s135 = sphi 0, %s119
    $region4: #{tpu_custom_call.1} parent=1 // loop_header_branch
      %19 = sbr.rel (%p17) target = $region8
    $region5: #{tpu_custom_call.1} parent=1 // loop_body
      %s21 = ssub.s32 %s16, 1
      %s22 = ssub.s32 %s16, 2
      %s29 = sadd.s32 1, %s24
      %p30 = scmp.ge.s32.totalorder %s29, 2
      %s31 = scalar_select %p30, 0, %s29
      %s32 = sadd.s32 1, %s23
      %s33 = scalar_select %p30, %s32, %s23
      %p34 = scmp.ge.s32.totalorder %s33, 2
      %s35 = scalar_select %p34, 0, %s33
      %s37 = sadd.s32 %s36, 1
      %p40 = scmp.eq.s32.totalorder %s16, 3
      %p41 = scmp.ne.s32.totalorder %s36, %s38
      %p42 = scmp.eq.s32.totalorder %s16, 0
      %p43 = por %p41, %p42
      %p44 = scmp.ne.s32.totalorder %s36, %s38
      %p45 = scmp.eq.s32.totalorder %s21, 3
      %p46 = por %p44, %p45
      %p47 = scmp.ne.s32.totalorder %s38, %s39
      %p48 = scmp.eq.s32.totalorder %s21, 0
      %p49 = por %p47, %p48
      %p50 = scmp.ne.s32.totalorder %s38, %s39
      %p51 = scmp.eq.s32.totalorder %s22, 3
      %p52 = por %p50, %p51
      %p54 = scmp.ne.s32.totalorder %s39, %s53
      %p55 = scmp.eq.s32.totalorder %s22, 0
      %p56 = por %p54, %p55
      %s57 = ssub.s32 %s24, %s31
      %s58 = ssub.s32 %s23, %s35
      %s59 = sor.u32 %s57, %s58
      %p60 = scmp.eq.s32.totalorder %s59, 0
      %s62 = sadd.s32 %s61, 1
      %s63 = scalar_select %p60, %s61, %s62
      %p66 = pneg %p60
      %p67 = scmp.eq.s32.totalorder %s16, 3
      %p68 = por %p66, %p67
      %p69 = scmp.ne.s32.totalorder %s61, %s64
      %p70 = scmp.eq.s32.totalorder %s16, 0
      %p71 = por %p69, %p70
      %p72 = scmp.ne.s32.totalorder %s61, %s64
      %p73 = scmp.eq.s32.totalorder %s21, 3
      %p74 = por %p72, %p73
      %p75 = scmp.ne.s32.totalorder %s64, %s65
      %p76 = scmp.eq.s32.totalorder %s21, 0
      %p77 = por %p75, %p76
      %p78 = scmp.ne.s32.totalorder %s64, %s65
      %p79 = scmp.eq.s32.totalorder %s22, 3
      %p80 = por %p78, %p79
      %p82 = scmp.ne.s32.totalorder %s65, %s81
      %p83 = scmp.eq.s32.totalorder %s22, 0
      %p84 = por %p82, %p83
      %s85 = ssub.s32 %s23, %s35
      %p86 = scmp.eq.s32.totalorder %s85, 0
      %s88 = sadd.s32 %s87, 1
      %s89 = scalar_select %p86, %s87, %s88
      %p92 = pneg %p86
      %p93 = scmp.eq.s32.totalorder %s16, 3
      %p94 = por %p92, %p93
      %p95 = scmp.ne.s32.totalorder %s87, %s90
      %p96 = scmp.eq.s32.totalorder %s16, 0
      %p97 = por %p95, %p96
      %p98 = scmp.ne.s32.totalorder %s87, %s90
      %p99 = scmp.eq.s32.totalorder %s21, 3
      %p100 = por %p98, %p99
      %p101 = scmp.ne.s32.totalorder %s90, %s91
      %p102 = scmp.eq.s32.totalorder %s21, 0
      %p103 = por %p101, %p102
      %p104 = scmp.ne.s32.totalorder %s90, %s91
      %p105 = scmp.eq.s32.totalorder %s22, 3
      %p106 = por %p104, %p105
      %p108 = scmp.ne.s32.totalorder %s91, %s107
      %p109 = scmp.eq.s32.totalorder %s22, 0
      %p110 = por %p108, %p109
      %s111 = ssub.s32 %s24, %s31
      %s112 = ssub.s32 %s23, %s35
      %s113 = sor.u32 %s111, %s112
      %p114 = scmp.eq.s32.totalorder %s113, 0
      %s116 = sadd.s32 %s115, 1
      %s117 = scalar_select %p114, %s115, %s116
      %p120 = pneg %p114
      %p121 = scmp.eq.s32.totalorder %s16, 3
      %p122 = por %p120, %p121
      %p123 = scmp.ne.s32.totalorder %s115, %s118
      %p124 = scmp.eq.s32.totalorder %s16, 0
      %p125 = por %p123, %p124
      %p126 = scmp.ne.s32.totalorder %s115, %s118
      %p127 = scmp.eq.s32.totalorder %s21, 3
      %p128 = por %p126, %p127
      %p129 = scmp.ne.s32.totalorder %s118, %s119
      %p130 = scmp.eq.s32.totalorder %s21, 0
      %p131 = por %p129, %p130
      %p132 = scmp.ne.s32.totalorder %s118, %s119
      %p133 = scmp.eq.s32.totalorder %s22, 3
      %p134 = por %p132, %p133
      %p136 = scmp.ne.s32.totalorder %s119, %s135
      %p137 = scmp.eq.s32.totalorder %s22, 0
      %p138 = por %p136, %p137
      %p139 = scmp.le.s32.totalorder 1, %s16
      %p140 = scmp.lt.s32.totalorder %s16, 5
      %p141 = pnand %p139, %p140
      %p142 = pneg %p141
      // Predicated region
      $region9: #{tpu_custom_call.1} parent=5 // pred_check
        _
      $region10: #{tpu_custom_call.1} parent=5 // pred_check_branch
        %144 = sbr.rel (%p141) target = $region12
      $region11: #{tpu_custom_call.1} parent=5 // pred_region
        %s145 = ssub.s32 %s16, 1
        // Predicated region
        $region13: #{tpu_custom_call.1} parent=11 // pred_check
          %p146 = pneg %p49
        $region14: #{tpu_custom_call.1} parent=11 // pred_check_branch
          %148 = sbr.rel (%p146) target = $region16
        $region15: #{tpu_custom_call.1} parent=11 // pred_region
          _
        $region16: #{tpu_custom_call.1} parent=11 // pred_fallthru
          _
      $region12: #{tpu_custom_call.1} parent=5 // pred_fallthru
        _
      %p149 = scmp.lt.s32.totalorder %s16, 4
      // Predicated region
      $region17: #{tpu_custom_call.1} parent=5 // pred_check
        %p150 = pneg %p149
      $region18: #{tpu_custom_call.1} parent=5 // pred_check_branch
        %152 = sbr.rel (%p150) target = $region20
      $region19: #{tpu_custom_call.1} parent=5 // pred_region
        // Predicated region
        $region21: #{tpu_custom_call.1} parent=19 // pred_check
          %p153 = pneg %p71
        $region22: #{tpu_custom_call.1} parent=19 // pred_check_branch
          %155 = sbr.rel (%p153) target = $region24
        $region23: #{tpu_custom_call.1} parent=19 // pred_region
          %s156 = sand.u32 %s61, 1
          %s157 = scalar_lea.sflag [#allocation4], %s156
          %s158 = sand.u32 %s61, 1
          %s159 = smul.addr %s158, 8
          %s160 = scalar_lea.vmem [#allocation3], %s159
          %s162 = ssub.s32 128, 128
          %163 = vsyncadd %s157, %s162
          %s164 = smul.addr %s24, 2
          %s165 = sadd.s32 %s23, %s164
          %s166 = smul.addr %s165, 128
          %s167 = scalar_lea.hbm %s1, %s166
          %s169 = sshll.u32 %s160, 4
          %s170 = int_to_ptr.vmem [resolvable:$true] %s169
          %172 = dma.hbm_to_vmem [thread:$0]  %s167, 128, %s170, %s157
        $region24: #{tpu_custom_call.1} parent=19 // pred_fallthru
          _
        // Predicated region
        $region25: #{tpu_custom_call.1} parent=19 // pred_check
          %p173 = pneg %p97
        $region26: #{tpu_custom_call.1} parent=19 // pred_check_branch
          %175 = sbr.rel (%p173) target = $region28
        $region27: #{tpu_custom_call.1} parent=19 // pred_region
          %p176 = scmp.lt.s32.totalorder %s23, 7
          %s177 = scalar_select %p176, %s23, 7
          %s178 = smul.addr %s177, 8
          %s179 = scalar_lea.vmem %s2, %s178
        $region28: #{tpu_custom_call.1} parent=19 // pred_fallthru
          _
      $region20: #{tpu_custom_call.1} parent=5 // pred_fallthru
        _
      %p180 = scmp.le.s32.totalorder 1, %s16
      %p181 = scmp.lt.s32.totalorder %s16, 5
      %p182 = pnand %p180, %p181
      %p183 = pneg %p182
      // Predicated region
      $region29: #{tpu_custom_call.1} parent=5 // pred_check
        _
      $region30: #{tpu_custom_call.1} parent=5 // pred_check_branch
        %185 = sbr.rel (%p182) target = $region32
      $region31: #{tpu_custom_call.1} parent=5 // pred_region
        %s186 = ssub.s32 %s16, 1
        %s187 = sand.u32 %s64, 1
        %s188 = scalar_lea.sflag [#allocation4], %s187
        %s189 = sand.u32 %s64, 1
        %s190 = smul.addr %s189, 8
        %s191 = scalar_lea.vmem [#allocation3], %s190
        // Predicated region
        $region33: #{tpu_custom_call.1} parent=31 // pred_check
          %p192 = pneg %p77
        $region34: #{tpu_custom_call.1} parent=31 // pred_check_branch
          %194 = sbr.rel (%p192) target = $region36
        $region35: #{tpu_custom_call.1} parent=31 // pred_region
          %195 = dma.done %s188, 128
        $region36: #{tpu_custom_call.1} parent=31 // pred_fallthru
          _
        %p196 = pneg %p49
        %p197 = pneg %p46
        %s198 = sand.u32 %s64, 1
        %s199 = scalar_lea.sflag [#allocation4], %s198
        %s200 = sand.u32 %s64, 1
        %s201 = smul.addr %s200, 8
        %s202 = scalar_lea.vmem [#allocation3], %s201
        %p203 = pneg %p77
        %p204 = pneg %p74
        %p205 = scmp.lt.s32.totalorder %s25, 7
        %s206 = scalar_select %p205, %s25, 7
        %s207 = smul.addr %s206, 8
        %s208 = scalar_lea.vmem %s2, %s207
        %p209 = pneg %p103
        %p210 = pneg %p100
        %p211 = pneg %p131
        %p212 = pneg %p128
        %s213 = sand.u32 %s118, 1
        %s214 = scalar_lea.sflag [#allocation5], %s213
        %s215 = sand.u32 %s118, 1
        %s216 = smul.addr %s215, 8
        %s217 = scalar_lea.vmem [#allocation6], %s216
        %p218 = scmp.lt.s32.totalorder %s25, 7
        %s219 = scalar_select %p218, %s25, 7
        %s220 = smul.addr %s219, 8
        %s221 = scalar_lea.vmem %s2, %s220
        %v222 = vld [vmem:[%s191] sm:$0xff]
        %v223 = vld [vmem:[%s221] sm:$0xff]
        %v224 = vadd.f32 %v222, %v223
        %225 = vst [vmem:[%s217] sm:$0xff] %v224
        %s226 = sand.u32 %s118, 1
        %s227 = scalar_lea.sflag [#allocation5], %s226
        %s228 = sand.u32 %s118, 1
        %s229 = smul.addr %s228, 8
        %s230 = scalar_lea.vmem [#allocation6], %s229
        // Predicated region
        $region37: #{tpu_custom_call.1} parent=31 // pred_check
          %p231 = pneg %p128
        $region38: #{tpu_custom_call.1} parent=31 // pred_check_branch
          %233 = sbr.rel (%p231) target = $region40
        $region39: #{tpu_custom_call.1} parent=31 // pred_region
          %s235 = ssub.s32 128, 128
          %236 = vsyncadd %s227, %s235
          %s237 = smul.addr %s26, 2
          %s238 = sadd.s32 %s25, %s237
          %s239 = smul.addr %s238, 128
          %s240 = scalar_lea.hbm %s3, %s239
          %s242 = sshll.u32 %s230, 4
          %s243 = int_to_ptr.vmem [resolvable:$true] %s242
          %245 = dma.vmem_to_hbm [thread:$0]  %s243, 128, %s240, %s227
        $region40: #{tpu_custom_call.1} parent=31 // pred_fallthru
          _
      $region32: #{tpu_custom_call.1} parent=5 // pred_fallthru
        _
      %p246 = scmp.le.s32.totalorder 2, %s16
      // Predicated region
      $region41: #{tpu_custom_call.1} parent=5 // pred_check
        %p247 = pneg %p246
      $region42: #{tpu_custom_call.1} parent=5 // pred_check_branch
        %249 = sbr.rel (%p247) target = $region44
      $region43: #{tpu_custom_call.1} parent=5 // pred_region
        %s250 = ssub.s32 %s16, 2
        // Predicated region
        $region45: #{tpu_custom_call.1} parent=43 // pred_check
          %p251 = pneg %p134
        $region46: #{tpu_custom_call.1} parent=43 // pred_check_branch
          %253 = sbr.rel (%p251) target = $region48
        $region47: #{tpu_custom_call.1} parent=43 // pred_region
          %s254 = sand.u32 %s119, 1
          %s255 = scalar_lea.sflag [#allocation5], %s254
          %s256 = sand.u32 %s119, 1
          %s257 = smul.addr %s256, 8
          %s258 = scalar_lea.vmem [#allocation6], %s257
          %259 = dma.done %s255, 128
        $region48: #{tpu_custom_call.1} parent=43 // pred_fallthru
          _
      $region44: #{tpu_custom_call.1} parent=5 // pred_fallthru
        _
    $region6: #{tpu_custom_call.1} parent=1 // loop_footer
      %s20 = sadd.s32 1, %s16
    $region7: #{tpu_custom_call.1} parent=1 // loop_footer_branch
      %15 = sbr.rel target = $region3
    $region8: #{tpu_custom_call.1} parent=1 // loop_exit
      _
    %260 = vsyncpa [#allocation4], 1
    %s261 = scalar_lea.sflag [#allocation4], 1
    %262 = vsyncpa %s261, 1
    %263 = vsyncpa [#allocation5], 1
    %s264 = scalar_lea.sflag [#allocation5], 1
    %265 = vsyncpa %s264, 1

</llo_original>
